<compile_context>
chip_gen: v5e
topology: v5e:2x2
jax: 0.10.0
libtpu: 0.0.40
codegen_flags: <defaults>
</compile_context>

<pallas_src>
import jax
import jax.numpy as jnp
import numpy as np
from jax.experimental import pallas as pl
from jax.experimental.pallas import tpu as pltpu

# ---------------- small synthetic shapes ----------------
B = 2            # batch
C = 3            # image channels (NCHW input)
H = W = 16       # spatial
T = 8            # max ingredient sequence length
D = 32           # feature dim
V = 128          # ingredient vocab size
PAD_VALUE = 0
LABEL_SMOOTHING = 0.1
LOSS_LANES = 128  # lane-dense width for the loss output


# ---------------- Pallas kernel (fully fused forward) ----------------
def ingredients_kernel(img_ref, wencf_ref, benc_ref, pos_ref, wdec_ref, bdec_ref,
                       ids_ref, probs_ref, loss_ref):
    # ---- image encoder: GAP folded into the weight -> one full-K MXU dot ----
    feat = jnp.dot(img_ref[...], wencf_ref[...],
                   preferred_element_type=jnp.float32)                   # (B, D)
    feat = jnp.tanh(feat + benc_ref[...])

    # ---- synthetic decoder logits, no (B*T, D) reshape ----
    feat_logits = jnp.dot(feat, wdec_ref[...],
                          preferred_element_type=jnp.float32)            # (B, V)
    pos_logits = jnp.dot(pos_ref[...], wdec_ref[...],
                         preferred_element_type=jnp.float32)             # (T, V)
    logits = (feat_logits[:, None, :] + pos_logits[None, :, :]
              + bdec_ref[...][None, :, :])                               # (B, T, V)

    # ---- softmax over vocab (lane axis); denominator reciprocal on the EUP ----
    m = jnp.max(logits, axis=-1, keepdims=True)
    e = jnp.exp(logits - m)
    inv = pl.reciprocal(jnp.sum(e, axis=-1, keepdims=True), approx=True)
    probs = e * inv                                                      # (B, T, V)

    # ---- mask_from_eos(eos=0, mult_before=False), fused in-kernel ----
    ids = ids_ref[...]                                                   # (B, T) int32
    ok = (ids != 0).astype(jnp.float32)[:, None, :]                      # (B, 1, T)
    j_idx = jax.lax.broadcasted_iota(jnp.int32, (1, T, T), 2)
    t_idx = jax.lax.broadcasted_iota(jnp.int32, (1, T, T), 1)
    relevant = jnp.logical_and(j_idx >= 1, j_idx <= t_idx)               # j in [1, t]
    mask = jnp.min(jnp.where(relevant, ok, 1.0), axis=-1)                # (B, T)

    # ---- permutation-invariant masked max over the sequence axis ----
    ingr_probs = jnp.max(probs * mask[:, :, None], axis=1)               # (B, V)
    probs_ref[...] = ingr_probs

    # ---- label2onehot + label smoothing, fused in-kernel ----
    vocab_iota = jax.lax.broadcasted_iota(jnp.int32, (B, T, V), 2)
    onehot = (vocab_iota == ids[:, :, None]).astype(jnp.float32)         # (B, T, V)
    tgt = jnp.max(onehot, axis=1)                                        # (B, V)
    pad_cols = jax.lax.broadcasted_iota(jnp.int32, (B, V), 1)
    tgt = jnp.where(pad_cols == PAD_VALUE, 0.0, tgt)
    tgt_s = jnp.where(tgt > 0.5, 1.0 - LABEL_SMOOTHING, LABEL_SMOOTHING / V)

    # ---- BCE vs smoothed one-hot target, mean over vocab ----
    eps = 1e-7
    p = jnp.clip(ingr_probs, eps, 1.0 - eps)
    bce = -(tgt_s * jnp.log(p) + (1.0 - tgt_s) * jnp.log(1.0 - p))       # (B, V)
    loss = jnp.mean(bce, axis=-1, keepdims=True)                         # (B, 1)
    loss_ref[...] = jnp.broadcast_to(loss, (B, LOSS_LANES))              # lane-dense store


# ---------------- wrapper (single dispatch under jit) ----------------
@jax.jit
def ingredients_forward(img_inputs, target_ingrs, params):
    b, c, h, w = img_inputs.shape
    img_flat = img_inputs.reshape(b, c * h * w)                          # (B, C*H*W)

    vmem = pl.BlockSpec(memory_space=pltpu.MemorySpace.VMEM)
    probs, loss = pl.pallas_call(
        ingredients_kernel,
        out_shape=(jax.ShapeDtypeStruct((B, V), jnp.float32),
                   jax.ShapeDtypeStruct((B, LOSS_LANES), jnp.float32)),
        in_specs=[vmem] * 7,
        out_specs=(vmem, vmem),
    )(img_flat, params["w_enc_fold"], params["b_enc"], params["pos_emb"],
      params["w_dec"], params["b_dec"], target_ingrs)

    return {"ingr_loss": loss[:, 0], "ingr_probs": probs}


# ---------------- pure-JAX reference (unfolded math) ----------------
def reference_forward(img_inputs, target_ingrs, params):
    img_pooled = jnp.mean(img_inputs, axis=(2, 3))                       # (B, C)
    feat = jnp.tanh(img_pooled @ params["w_enc"] + params["b_enc"])
    hidden = feat[:, None, :] + params["pos_emb"][None, :, :]
    logits = hidden @ params["w_dec"] + params["b_dec"]
    probs = jax.nn.softmax(logits, axis=-1)
    keep = (target_ingrs != 0).astype(jnp.float32).at[:, 0].set(1.0)
    mask = jnp.cumprod(keep, axis=1)                                     # mult_before=False
    ingr_probs = jnp.max(probs * mask[:, :, None], axis=1)
    oh = jnp.max(jax.nn.one_hot(target_ingrs, V, dtype=jnp.float32), axis=1)
    oh = oh.at[:, PAD_VALUE].set(0.0)
    tgt_s = jnp.where(oh > 0.5, 1.0 - LABEL_SMOOTHING, LABEL_SMOOTHING / V)
    p = jnp.clip(ingr_probs, 1e-7, 1.0 - 1e-7)
    bce = -(tgt_s * jnp.log(p) + (1.0 - tgt_s) * jnp.log(1.0 - p))
    return jnp.mean(bce, axis=-1), ingr_probs


if __name__ == "__main__":
    key = jax.random.PRNGKey(0)
    k_img, k_we, k_be, k_pos, k_wd, k_bd = jax.random.split(key, 6)

    img_inputs = jax.random.normal(k_img, (B, C, H, W), dtype=jnp.float32)
    target_ingrs = jnp.array([[5, 17, 42, 3, 0, 0, 0, 0],
                              [7, 99, 0, 0, 0, 0, 0, 0]], dtype=jnp.int32)

    w_enc = 0.1 * jax.random.normal(k_we, (C, D), dtype=jnp.float32)
    params = {
        "w_enc": w_enc,
        # GAP folded into the encoder weight, built once at param construction.
        "w_enc_fold": jnp.repeat(w_enc, H * W, axis=0) / float(H * W),   # (C*H*W, D)
        "b_enc": 0.1 * jax.random.normal(k_be, (1, D), dtype=jnp.float32),
        "pos_emb": 0.1 * jax.random.normal(k_pos, (T, D), dtype=jnp.float32),
        "w_dec": 0.1 * jax.random.normal(k_wd, (D, V), dtype=jnp.float32),
        "b_dec": 0.1 * jax.random.normal(k_bd, (1, V), dtype=jnp.float32),
    }

    out = ingredients_forward(img_inputs, target_ingrs, params)
    jax.block_until_ready(out)

    ref_loss, ref_probs = reference_forward(img_inputs, target_ingrs, params)
    # Tolerance covers the EUP approximate-reciprocal softmax normalization.
    np.testing.assert_allclose(np.asarray(out["ingr_probs"]), np.asarray(ref_probs),
                               rtol=2e-3, atol=2e-4)
    np.testing.assert_allclose(np.asarray(out["ingr_loss"]), np.asarray(ref_loss),
                               rtol=2e-3, atol=2e-4)

    print("KERNEL_OK")
</pallas_src>

<mosaic_0001>
module attributes {stable_mosaic.version = 11 : i64} {
  func.func @ingredients_kernel(%arg0: memref<2x768xf32, #tpu.memory_space<vmem>>, %arg1: memref<768x32xf32, #tpu.memory_space<vmem>>, %arg2: memref<1x32xf32, #tpu.memory_space<vmem>>, %arg3: memref<8x32xf32, #tpu.memory_space<vmem>>, %arg4: memref<32x128xf32, #tpu.memory_space<vmem>>, %arg5: memref<1x128xf32, #tpu.memory_space<vmem>>, %arg6: memref<2x8xi32, #tpu.memory_space<vmem>>, %arg7: memref<2x128xf32, #tpu.memory_space<vmem>>, %arg8: memref<2x128xf32, #tpu.memory_space<vmem>>) attributes {dimension_semantics = [], scalar_prefetch = 0 : i64, scratch_operands = 0 : i64, tpu.core_type = #tpu.core_type<tc>} {
    %c0 = arith.constant 0 : index
    %c0_0 = arith.constant 0 : index
    %0 = vector.load %arg0[%c0, %c0_0] : memref<2x768xf32, #tpu.memory_space<vmem>>, vector<2x768xf32>
    %c0_1 = arith.constant 0 : index
    %c0_2 = arith.constant 0 : index
    %1 = vector.load %arg1[%c0_1, %c0_2] : memref<768x32xf32, #tpu.memory_space<vmem>>, vector<768x32xf32>
    %cst = arith.constant dense<0.000000e+00> : vector<2x32xf32>
    %2 = tpu.matmul %0, %1, %cst {dimension_numbers = #tpu.dot_dimension_numbers<[1], [0], [0], [1], [0, 0, 1, 1], [], []>} : vector<2x768xf32>, vector<768x32xf32>, vector<2x32xf32> -> vector<2x32xf32>
    %c0_3 = arith.constant 0 : index
    %c0_4 = arith.constant 0 : index
    %3 = vector.load %arg2[%c0_3, %c0_4] : memref<1x32xf32, #tpu.memory_space<vmem>>, vector<1x32xf32>
    %4 = vector.broadcast %3 : vector<1x32xf32> to vector<2x32xf32>
    %5 = arith.addf %2, %4 : vector<2x32xf32>
    %6 = math.tanh %5 : vector<2x32xf32>
    %c0_5 = arith.constant 0 : index
    %c0_6 = arith.constant 0 : index
    %7 = vector.load %arg4[%c0_5, %c0_6] : memref<32x128xf32, #tpu.memory_space<vmem>>, vector<32x128xf32>
    %cst_7 = arith.constant dense<0.000000e+00> : vector<2x128xf32>
    %8 = tpu.matmul %6, %7, %cst_7 {dimension_numbers = #tpu.dot_dimension_numbers<[1], [0], [0], [1], [0, 0, 1, 1], [], []>} : vector<2x32xf32>, vector<32x128xf32>, vector<2x128xf32> -> vector<2x128xf32>
    %c0_8 = arith.constant 0 : index
    %c0_9 = arith.constant 0 : index
    %9 = vector.load %arg3[%c0_8, %c0_9] : memref<8x32xf32, #tpu.memory_space<vmem>>, vector<8x32xf32>
    %c0_10 = arith.constant 0 : index
    %c0_11 = arith.constant 0 : index
    %10 = vector.load %arg4[%c0_10, %c0_11] : memref<32x128xf32, #tpu.memory_space<vmem>>, vector<32x128xf32>
    %cst_12 = arith.constant dense<0.000000e+00> : vector<8x128xf32>
    %11 = tpu.matmul %9, %10, %cst_12 {dimension_numbers = #tpu.dot_dimension_numbers<[1], [0], [0], [1], [0, 0, 1, 1], [], []>} : vector<8x32xf32>, vector<32x128xf32>, vector<8x128xf32> -> vector<8x128xf32>
    %12 = vector.shape_cast %8 : vector<2x128xf32> to vector<2x1x128xf32>
    %13 = vector.shape_cast %11 : vector<8x128xf32> to vector<1x8x128xf32>
    %14 = vector.broadcast %12 : vector<2x1x128xf32> to vector<2x8x128xf32>
    %15 = vector.broadcast %13 : vector<1x8x128xf32> to vector<2x8x128xf32>
    %16 = arith.addf %14, %15 : vector<2x8x128xf32>
    %c0_13 = arith.constant 0 : index
    %c0_14 = arith.constant 0 : index
    %17 = vector.load %arg5[%c0_13, %c0_14] : memref<1x128xf32, #tpu.memory_space<vmem>>, vector<1x128xf32>
    %18 = vector.shape_cast %17 : vector<1x128xf32> to vector<1x1x128xf32>
    %19 = vector.broadcast %18 : vector<1x1x128xf32> to vector<2x8x128xf32>
    %20 = arith.addf %16, %19 : vector<2x8x128xf32>
    %cst_15 = arith.constant dense<0xFF800000> : vector<2x8xf32>
    %21 = vector.multi_reduction <maximumf>, %20, %cst_15 [2] : vector<2x8x128xf32> to vector<2x8xf32>
    %22 = vector.shape_cast %21 : vector<2x8xf32> to vector<2x8x1xf32>
    %23 = vector.broadcast %22 : vector<2x8x1xf32> to vector<2x8x128xf32>
    %24 = arith.subf %20, %23 : vector<2x8x128xf32>
    %25 = math.exp %24 : vector<2x8x128xf32>
    %cst_16 = arith.constant dense<0.000000e+00> : vector<2x8xf32>
    %26 = vector.multi_reduction <add>, %25, %cst_16 [2] : vector<2x8x128xf32> to vector<2x8xf32>
    %27 = vector.shape_cast %26 : vector<2x8xf32> to vector<2x8x1xf32>
    %28 = tpu.reciprocal %27 {approx = true} : vector<2x8x1xf32> -> vector<2x8x1xf32>
    %29 = vector.broadcast %28 : vector<2x8x1xf32> to vector<2x8x128xf32>
    %30 = arith.mulf %25, %29 : vector<2x8x128xf32>
    %c0_17 = arith.constant 0 : index
    %c0_18 = arith.constant 0 : index
    %31 = vector.load %arg6[%c0_17, %c0_18] : memref<2x8xi32, #tpu.memory_space<vmem>>, vector<2x8xi32>
    %c0_i32 = arith.constant 0 : i32
    %32 = vector.broadcast %c0_i32 : i32 to vector<2x8xi32>
    %33 = arith.cmpi ne, %31, %32 : vector<2x8xi32>
    %34 = arith.extui %33 : vector<2x8xi1> to vector<2x8xi32>
    %35 = arith.sitofp %34 : vector<2x8xi32> to vector<2x8xf32>
    %36 = vector.shape_cast %35 : vector<2x8xf32> to vector<2x1x8xf32>
    %37 = tpu.iota {dimensions = array<i32: 2>} : vector<1x8x8xi32>
    %38 = tpu.iota {dimensions = array<i32: 1>} : vector<1x8x8xi32>
    %c1_i32 = arith.constant 1 : i32
    %39 = vector.broadcast %c1_i32 : i32 to vector<1x8x8xi32>
    %40 = arith.cmpi sge, %37, %39 : vector<1x8x8xi32>
    %41 = arith.cmpi sle, %37, %38 : vector<1x8x8xi32>
    %42 = arith.andi %40, %41 : vector<1x8x8xi1>
    %cst_19 = arith.constant 1.000000e+00 : f32
    %43 = vector.shape_cast %42 : vector<1x8x8xi1> to vector<1x8x8xi1>
    %44 = vector.broadcast %43 : vector<1x8x8xi1> to vector<2x8x8xi1>
    %45 = vector.shape_cast %36 : vector<2x1x8xf32> to vector<2x1x8xf32>
    %46 = vector.broadcast %45 : vector<2x1x8xf32> to vector<2x8x8xf32>
    %47 = vector.broadcast %cst_19 : f32 to vector<2x8x8xf32>
    %48 = arith.select %44, %46, %47 : vector<2x8x8xi1>, vector<2x8x8xf32>
    %cst_20 = arith.constant dense<0x7F800000> : vector<2x8xf32>
    %49 = vector.multi_reduction <minimumf>, %48, %cst_20 [2] : vector<2x8x8xf32> to vector<2x8xf32>
    %50 = vector.shape_cast %49 : vector<2x8xf32> to vector<2x8x1xf32>
    %51 = vector.broadcast %50 : vector<2x8x1xf32> to vector<2x8x128xf32>
    %52 = arith.mulf %30, %51 : vector<2x8x128xf32>
    %cst_21 = arith.constant dense<0xFF800000> : vector<2x128xf32>
    %53 = vector.multi_reduction <maximumf>, %52, %cst_21 [1] : vector<2x8x128xf32> to vector<2x128xf32>
    %c0_22 = arith.constant 0 : index
    %c0_23 = arith.constant 0 : index
    %54 = vector.load %arg7[%c0_22, %c0_23] : memref<2x128xf32, #tpu.memory_space<vmem>>, vector<2x128xf32>
    tpu.vector_store %arg7[%c0_22, %c0_23], %53 {strides = array<i32>} : memref<2x128xf32, #tpu.memory_space<vmem>>, vector<2x128xf32>,
    %55 = tpu.iota {dimensions = array<i32: 2>} : vector<2x8x128xi32>
    %56 = vector.shape_cast %31 : vector<2x8xi32> to vector<2x8x1xi32>
    %57 = vector.broadcast %56 : vector<2x8x1xi32> to vector<2x8x128xi32>
    %58 = arith.cmpi eq, %55, %57 : vector<2x8x128xi32>
    %59 = arith.extui %58 : vector<2x8x128xi1> to vector<2x8x128xi32>
    %60 = arith.sitofp %59 : vector<2x8x128xi32> to vector<2x8x128xf32>
    %cst_24 = arith.constant dense<0xFF800000> : vector<2x128xf32>
    %61 = vector.multi_reduction <maximumf>, %60, %cst_24 [1] : vector<2x8x128xf32> to vector<2x128xf32>
    %62 = tpu.iota {dimensions = array<i32: 1>} : vector<2x128xi32>
    %c0_i32_25 = arith.constant 0 : i32
    %63 = vector.broadcast %c0_i32_25 : i32 to vector<2x128xi32>
    %64 = arith.cmpi eq, %62, %63 : vector<2x128xi32>
    %cst_26 = arith.constant 0.000000e+00 : f32
    %65 = vector.broadcast %cst_26 : f32 to vector<2x128xf32>
    %66 = arith.select %64, %65, %61 : vector<2x128xi1>, vector<2x128xf32>
    %cst_27 = arith.constant 5.000000e-01 : f32
    %67 = vector.broadcast %cst_27 : f32 to vector<2x128xf32>
    %68 = arith.cmpf ogt, %66, %67 : vector<2x128xf32>
    %cst_28 = arith.constant 0.899999976 : f32
    %cst_29 = arith.constant 7.812500e-04 : f32
    %69 = vector.broadcast %cst_28 : f32 to vector<2x128xf32>
    %70 = vector.broadcast %cst_29 : f32 to vector<2x128xf32>
    %71 = arith.select %68, %69, %70 : vector<2x128xi1>, vector<2x128xf32>
    %cst_30 = arith.constant 1.000000e-07 : f32
    %cst_31 = arith.constant 0.99999988 : f32
    %72 = vector.broadcast %cst_30 : f32 to vector<2x128xf32>
    %73 = arith.maximumf %72, %53 : vector<2x128xf32>
    %74 = vector.broadcast %cst_31 : f32 to vector<2x128xf32>
    %75 = arith.minimumf %74, %73 : vector<2x128xf32>
    %76 = math.log %75 : vector<2x128xf32>
    %77 = arith.mulf %71, %76 : vector<2x128xf32>
    %cst_32 = arith.constant 1.000000e+00 : f32
    %78 = vector.broadcast %cst_32 : f32 to vector<2x128xf32>
    %79 = arith.subf %78, %71 : vector<2x128xf32>
    %cst_33 = arith.constant 1.000000e+00 : f32
    %80 = vector.broadcast %cst_33 : f32 to vector<2x128xf32>
    %81 = arith.subf %80, %75 : vector<2x128xf32>
    %82 = math.log %81 : vector<2x128xf32>
    %83 = arith.mulf %79, %82 : vector<2x128xf32>
    %84 = arith.addf %77, %83 : vector<2x128xf32>
    %cst_34 = arith.constant 0.000000e+00 : f32
    %85 = vector.broadcast %cst_34 : f32 to vector<2x128xf32>
    %86 = arith.subf %85, %84 : vector<2x128xf32>
    %cst_35 = arith.constant dense<0.000000e+00> : vector<2xf32>
    %87 = vector.multi_reduction <add>, %86, %cst_35 [1] : vector<2x128xf32> to vector<2xf32>
    %88 = vector.shape_cast %87 : vector<2xf32> to vector<2x1xf32>
    %cst_36 = arith.constant 1.280000e+02 : f32
    %89 = vector.broadcast %cst_36 : f32 to vector<2x1xf32>
    %90 = arith.divf %88, %89 : vector<2x1xf32>
    %91 = vector.shape_cast %90 : vector<2x1xf32> to vector<2x1xf32>
    %92 = vector.broadcast %91 : vector<2x1xf32> to vector<2x128xf32>
    %c0_37 = arith.constant 0 : index
    %c0_38 = arith.constant 0 : index
    %93 = vector.load %arg8[%c0_37, %c0_38] : memref<2x128xf32, #tpu.memory_space<vmem>>, vector<2x128xf32>
    tpu.vector_store %arg8[%c0_37, %c0_38], %92 {strides = array<i32>} : memref<2x128xf32, #tpu.memory_space<vmem>>, vector<2x128xf32>,
    return
  }
}

</mosaic_0001>

<llo_original>
// kernel: ingredients_forward.1
$region0: #{ingredients_forward.1}
  #allocation0 [shape = 'u32[]', space=smem, size = 0x4, offset = 0x4, fixed_abs, tag = 'smem constant byte address 0x4 - core index']
  #allocation1 [shape = 'u32[72,128]{1,0:T(1,128)}', space=vmem, size = 0x9000, scoped, tag = 'internal scratch']
  %s0 = inlined_call_operand.vmem [shape: f32[2,768], index: 0, kind: input, shape index: {}]
  %s1 = inlined_call_operand.vmem [shape: f32[768,32], index: 1, kind: input, shape index: {}]
  %s2 = inlined_call_operand.vmem [shape: f32[1,32], index: 2, kind: input, shape index: {}]
  %s3 = inlined_call_operand.vmem [shape: f32[8,32], index: 3, kind: input, shape index: {}]
  %s4 = inlined_call_operand.vmem [shape: f32[32,128], index: 4, kind: input, shape index: {}]
  %s5 = inlined_call_operand.vmem [shape: f32[1,128], index: 5, kind: input, shape index: {}]
  %s6 = inlined_call_operand.vmem [shape: s32[2,8], index: 6, kind: input, shape index: {}]
  %s7 = inlined_call_operand.hbm [shape: f32[2,128], index: 7, kind: output, shape index: {0}]
  %s8 = inlined_call_operand.vmem [shape: f32[2,128], index: 8, kind: output, shape index: {1}]
  %9 = xla_tuple %s7, %s8
  %s10 = sld [smem:[#allocation0]]
  $region46: #{ingredients_forward.1} parent=0
    _
  %s12 = ssub.s32 1, %s10
  %s13 = scalar_select 0, %s12, %s10
  $region1: #{ingredients_forward.1} parent=0
    #allocation2 [shape = 'u8[1024]{0}', space=vmem, size = 0x400, scoped, tag = 'output window, operand 0, single buffered']
    #allocation3 [shape = 's32[1]{0}', space=sflag, size = 0x4, scoped, tag = 'scoped memory for ingredients_forward.1']
    %14 = vsyncpa [#allocation3], 0
    // Predicated region
    $region2: #{ingredients_forward.1} parent=1 // pred_check
      _
    $region3: #{ingredients_forward.1} parent=1 // pred_check_branch
      %16 = sbr.rel (0) target = $region5
    $region4: #{ingredients_forward.1} parent=1 // pred_region
      _
    $region5: #{ingredients_forward.1} parent=1 // pred_fallthru
      _
    // Predicated region
    $region6: #{ingredients_forward.1} parent=1 // pred_check
      _
    $region7: #{ingredients_forward.1} parent=1 // pred_check_branch
      %18 = sbr.rel (0) target = $region9
    $region8: #{ingredients_forward.1} parent=1 // pred_region
      _
    $region9: #{ingredients_forward.1} parent=1 // pred_fallthru
      _
    // Predicated region
    $region10: #{ingredients_forward.1} parent=1 // pred_check
      _
    $region11: #{ingredients_forward.1} parent=1 // pred_check_branch
      %20 = sbr.rel (0) target = $region13
    $region12: #{ingredients_forward.1} parent=1 // pred_region
      _
    $region13: #{ingredients_forward.1} parent=1 // pred_fallthru
      _
    // Predicated region
    $region14: #{ingredients_forward.1} parent=1 // pred_check
      _
    $region15: #{ingredients_forward.1} parent=1 // pred_check_branch
      %22 = sbr.rel (0) target = $region17
    $region16: #{ingredients_forward.1} parent=1 // pred_region
      _
    $region17: #{ingredients_forward.1} parent=1 // pred_fallthru
      _
    // Predicated region
    $region18: #{ingredients_forward.1} parent=1 // pred_check
      _
    $region19: #{ingredients_forward.1} parent=1 // pred_check_branch
      %24 = sbr.rel (0) target = $region21
    $region20: #{ingredients_forward.1} parent=1 // pred_region
      _
    $region21: #{ingredients_forward.1} parent=1 // pred_fallthru
      _
    // Predicated region
    $region22: #{ingredients_forward.1} parent=1 // pred_check
      _
    $region23: #{ingredients_forward.1} parent=1 // pred_check_branch
      %26 = sbr.rel (0) target = $region25
    $region24: #{ingredients_forward.1} parent=1 // pred_region
      _
    $region25: #{ingredients_forward.1} parent=1 // pred_fallthru
      _
    // Predicated region
    $region26: #{ingredients_forward.1} parent=1 // pred_check
      _
    $region27: #{ingredients_forward.1} parent=1 // pred_check_branch
      %28 = sbr.rel (0) target = $region29
    $region28: #{ingredients_forward.1} parent=1 // pred_region
      _
    $region29: #{ingredients_forward.1} parent=1 // pred_fallthru
      _
    %v29 = vld [vmem:[%s0] sm:$0xff]
    %v30 = vld [vmem:[%s0 + $0x8] sm:$0xf]
    %v31 = vld [vmem:[%s1] sm:$0xff]
    %v32 = vld [vmem:[%s1 + $0x8] sm:$0xff]
    %v33 = vld [vmem:[%s1 + $0x10] sm:$0xff]
    %v34 = vld [vmem:[%s1 + $0x18] sm:$0xff]
    %v35 = vld [vmem:[%s1 + $0x20] sm:$0xff]
    %v36 = vld [vmem:[%s1 + $0x28] sm:$0xff]
    %v37 = vld [vmem:[%s1 + $0x30] sm:$0xff]
    %v38 = vld [vmem:[%s1 + $0x38] sm:$0xff]
    %v39 = vld [vmem:[%s1 + $0x40] sm:$0xff]
    %v40 = vld [vmem:[%s1 + $0x48] sm:$0xff]
    %v41 = vld [vmem:[%s1 + $0x50] sm:$0xff]
    %v42 = vld [vmem:[%s1 + $0x58] sm:$0xff]
    %v43 = vld [vmem:[%s1 + $0x60] sm:$0xff]
    %v44 = vld [vmem:[%s1 + $0x68] sm:$0xff]
    %v45 = vld [vmem:[%s1 + $0x70] sm:$0xff]
    %v46 = vld [vmem:[%s1 + $0x78] sm:$0xff]
    %v47 = vld [vmem:[%s1 + $0x80] sm:$0xff]
    %v48 = vld [vmem:[%s1 + $0x88] sm:$0xff]
    %v49 = vld [vmem:[%s1 + $0x90] sm:$0xff]
    %v50 = vld [vmem:[%s1 + $0x98] sm:$0xff]
    %v51 = vld [vmem:[%s1 + $0xa0] sm:$0xff]
    %v52 = vld [vmem:[%s1 + $0xa8] sm:$0xff]
    %v53 = vld [vmem:[%s1 + $0xb0] sm:$0xff]
    %v54 = vld [vmem:[%s1 + $0xb8] sm:$0xff]
    %v55 = vld [vmem:[%s1 + $0xc0] sm:$0xff]
    %v56 = vld [vmem:[%s1 + $0xc8] sm:$0xff]
    %v57 = vld [vmem:[%s1 + $0xd0] sm:$0xff]
    %v58 = vld [vmem:[%s1 + $0xd8] sm:$0xff]
    %v59 = vld [vmem:[%s1 + $0xe0] sm:$0xff]
    %v60 = vld [vmem:[%s1 + $0xe8] sm:$0xff]
    %v61 = vld [vmem:[%s1 + $0xf0] sm:$0xff]
    %v62 = vld [vmem:[%s1 + $0xf8] sm:$0xff]
    %v63 = vld [vmem:[%s1 + $0x100] sm:$0xff]
    %v64 = vld [vmem:[%s1 + $0x108] sm:$0xff]
    %v65 = vld [vmem:[%s1 + $0x110] sm:$0xff]
    %v66 = vld [vmem:[%s1 + $0x118] sm:$0xff]
    %v67 = vld [vmem:[%s1 + $0x120] sm:$0xff]
    %v68 = vld [vmem:[%s1 + $0x128] sm:$0xff]
    %v69 = vld [vmem:[%s1 + $0x130] sm:$0xff]
    %v70 = vld [vmem:[%s1 + $0x138] sm:$0xff]
    %v71 = vld [vmem:[%s1 + $0x140] sm:$0xff]
    %v72 = vld [vmem:[%s1 + $0x148] sm:$0xff]
    %v73 = vld [vmem:[%s1 + $0x150] sm:$0xff]
    %v74 = vld [vmem:[%s1 + $0x158] sm:$0xff]
    %v75 = vld [vmem:[%s1 + $0x160] sm:$0xff]
    %v76 = vld [vmem:[%s1 + $0x168] sm:$0xff]
    %v77 = vld [vmem:[%s1 + $0x170] sm:$0xff]
    %v78 = vld [vmem:[%s1 + $0x178] sm:$0xff]
    %v79 = vld [vmem:[%s1 + $0x180] sm:$0xff]
    %v80 = vld [vmem:[%s1 + $0x188] sm:$0xff]
    %v81 = vld [vmem:[%s1 + $0x190] sm:$0xff]
    %v82 = vld [vmem:[%s1 + $0x198] sm:$0xff]
    %v83 = vld [vmem:[%s1 + $0x1a0] sm:$0xff]
    %v84 = vld [vmem:[%s1 + $0x1a8] sm:$0xff]
    %v85 = vld [vmem:[%s1 + $0x1b0] sm:$0xff]
    %v86 = vld [vmem:[%s1 + $0x1b8] sm:$0xff]
    %v87 = vld [vmem:[%s1 + $0x1c0] sm:$0xff]
    %v88 = vld [vmem:[%s1 + $0x1c8] sm:$0xff]
    %v89 = vld [vmem:[%s1 + $0x1d0] sm:$0xff]
    %v90 = vld [vmem:[%s1 + $0x1d8] sm:$0xff]
    %v91 = vld [vmem:[%s1 + $0x1e0] sm:$0xff]
    %v92 = vld [vmem:[%s1 + $0x1e8] sm:$0xff]
    %v93 = vld [vmem:[%s1 + $0x1f0] sm:$0xff]
    %v94 = vld [vmem:[%s1 + $0x1f8] sm:$0xff]
    %v95 = vld [vmem:[%s1 + $0x200] sm:$0xff]
    %v96 = vld [vmem:[%s1 + $0x208] sm:$0xff]
    %v97 = vld [vmem:[%s1 + $0x210] sm:$0xff]
    %v98 = vld [vmem:[%s1 + $0x218] sm:$0xff]
    %v99 = vld [vmem:[%s1 + $0x220] sm:$0xff]
    %v100 = vld [vmem:[%s1 + $0x228] sm:$0xff]
    %v101 = vld [vmem:[%s1 + $0x230] sm:$0xff]
    %v102 = vld [vmem:[%s1 + $0x238] sm:$0xff]
    %v103 = vld [vmem:[%s1 + $0x240] sm:$0xff]
    %v104 = vld [vmem:[%s1 + $0x248] sm:$0xff]
    %v105 = vld [vmem:[%s1 + $0x250] sm:$0xff]
    %v106 = vld [vmem:[%s1 + $0x258] sm:$0xff]
    %v107 = vld [vmem:[%s1 + $0x260] sm:$0xff]
    %v108 = vld [vmem:[%s1 + $0x268] sm:$0xff]
    %v109 = vld [vmem:[%s1 + $0x270] sm:$0xff]
    %v110 = vld [vmem:[%s1 + $0x278] sm:$0xff]
    %v111 = vld [vmem:[%s1 + $0x280] sm:$0xff]
    %v112 = vld [vmem:[%s1 + $0x288] sm:$0xff]
    %v113 = vld [vmem:[%s1 + $0x290] sm:$0xff]
    %v114 = vld [vmem:[%s1 + $0x298] sm:$0xff]
    %v115 = vld [vmem:[%s1 + $0x2a0] sm:$0xff]
    %v116 = vld [vmem:[%s1 + $0x2a8] sm:$0xff]
    %v117 = vld [vmem:[%s1 + $0x2b0] sm:$0xff]
    %v118 = vld [vmem:[%s1 + $0x2b8] sm:$0xff]
    %v119 = vld [vmem:[%s1 + $0x2c0] sm:$0xff]
    %v120 = vld [vmem:[%s1 + $0x2c8] sm:$0xff]
    %v121 = vld [vmem:[%s1 + $0x2d0] sm:$0xff]
    %v122 = vld [vmem:[%s1 + $0x2d8] sm:$0xff]
    %v123 = vld [vmem:[%s1 + $0x2e0] sm:$0xff]
    %v124 = vld [vmem:[%s1 + $0x2e8] sm:$0xff]
    %v125 = vld [vmem:[%s1 + $0x2f0] sm:$0xff]
    %v126 = vld [vmem:[%s1 + $0x2f8] sm:$0xff]
    %v127 = vld [vmem:[%s2] sm:$0x1]
    %v129 = vperm.slane %v127, 0
    %133 = vst [vmem:[#allocation1] ss:$4 sm:$0xff] %v29
    %s134 = scalar_lea.vmem [#allocation1], 32
    %135 = vst [vmem:[%s134] ss:$4 sm:$0xff] %v30
    %v136 = vld.sshfl [vmem:[#allocation1] sm:$0xff pattern:$0x73625140]
    %v137 = vld.sshfl [vmem:[#allocation1 + $0x8] sm:$0xff pattern:$0x73625140]
    %v138 = vld.sshfl [vmem:[#allocation1 + $0x10] sm:$0xff pattern:$0x73625140]
    %v139 = vld.sshfl [vmem:[#allocation1 + $0x18] sm:$0xff pattern:$0x73625140]
    %v140 = vld.sshfl [vmem:[#allocation1 + $0x20] sm:$0xff pattern:$0x73625140]
    %v141 = vld.sshfl [vmem:[#allocation1 + $0x28] sm:$0xff pattern:$0x73625140]
    %148 = vmatpush.msra.mxu0 %v46
    %149 = vmatpush.msra.mxu0 %v45
    %150 = vmatpush.msra.mxu0 %v44
    %151 = vmatpush.msra.mxu0 %v43
    %152 = vmatpush.msra.mxu0 %v42
    %153 = vmatpush.msra.mxu0 %v41
    %154 = vmatpush.msra.mxu0 %v40
    %155 = vmatpush.msra.mxu0 %v39
    %156 = vmatpush.msra.mxu0 %v38
    %157 = vmatpush.msra.mxu0 %v37
    %158 = vmatpush.msra.mxu0 %v36
    %159 = vmatpush.msra.mxu0 %v35
    %160 = vmatpush.msra.mxu0 %v34
    %161 = vmatpush.msra.mxu0 %v33
    %162 = vmatpush.msra.mxu0 %v32
    %163 = vmatpush.msra.mxu0 %v31
    %164 = vmatmul.f32.gmra.mxu0 %v136
    %v165 = vpop.f32.mrf.mxu0
    %v166 = vadd.f32 %v129, %v165
    %167 = vdwg.mxu0
    %168 = vmatpush.msra.mxu0 %v62
    %169 = vmatpush.msra.mxu0 %v61
    %170 = vmatpush.msra.mxu0 %v60
    %171 = vmatpush.msra.mxu0 %v59
    %172 = vmatpush.msra.mxu0 %v58
    %173 = vmatpush.msra.mxu0 %v57
    %174 = vmatpush.msra.mxu0 %v56
    %175 = vmatpush.msra.mxu0 %v55
    %176 = vmatpush.msra.mxu0 %v54
    %177 = vmatpush.msra.mxu0 %v53
    %178 = vmatpush.msra.mxu0 %v52
    %179 = vmatpush.msra.mxu0 %v51
    %180 = vmatpush.msra.mxu0 %v50
    %181 = vmatpush.msra.mxu0 %v49
    %182 = vmatpush.msra.mxu0 %v48
    %183 = vmatpush.msra.mxu0 %v47
    %184 = vmatmul.f32.gmra.mxu0 %v137
    %v185 = vpop.f32.mrf.mxu0
    %v186 = vadd.f32 %v166, %v185
    %187 = vdwg.mxu0
    %188 = vmatpush.msra.mxu0 %v78
    %189 = vmatpush.msra.mxu0 %v77
    %190 = vmatpush.msra.mxu0 %v76
    %191 = vmatpush.msra.mxu0 %v75
    %192 = vmatpush.msra.mxu0 %v74
    %193 = vmatpush.msra.mxu0 %v73
    %194 = vmatpush.msra.mxu0 %v72
    %195 = vmatpush.msra.mxu0 %v71
    %196 = vmatpush.msra.mxu0 %v70
    %197 = vmatpush.msra.mxu0 %v69
    %198 = vmatpush.msra.mxu0 %v68
    %199 = vmatpush.msra.mxu0 %v67
    %200 = vmatpush.msra.mxu0 %v66
    %201 = vmatpush.msra.mxu0 %v65
    %202 = vmatpush.msra.mxu0 %v64
    %203 = vmatpush.msra.mxu0 %v63
    %204 = vmatmul.f32.gmra.mxu0 %v138
    %v205 = vpop.f32.mrf.mxu0
    %v206 = vadd.f32 %v186, %v205
    %207 = vdwg.mxu0
    %208 = vmatpush.msra.mxu0 %v94
    %209 = vmatpush.msra.mxu0 %v93
    %210 = vmatpush.msra.mxu0 %v92
    %211 = vmatpush.msra.mxu0 %v91
    %212 = vmatpush.msra.mxu0 %v90
    %213 = vmatpush.msra.mxu0 %v89
    %214 = vmatpush.msra.mxu0 %v88
    %215 = vmatpush.msra.mxu0 %v87
    %216 = vmatpush.msra.mxu0 %v86
    %217 = vmatpush.msra.mxu0 %v85
    %218 = vmatpush.msra.mxu0 %v84
    %219 = vmatpush.msra.mxu0 %v83
    %220 = vmatpush.msra.mxu0 %v82
    %221 = vmatpush.msra.mxu0 %v81
    %222 = vmatpush.msra.mxu0 %v80
    %223 = vmatpush.msra.mxu0 %v79
    %224 = vmatmul.f32.gmra.mxu0 %v139
    %v225 = vpop.f32.mrf.mxu0
    %v226 = vadd.f32 %v206, %v225
    %227 = vdwg.mxu0
    %228 = vmatpush.msra.mxu0 %v110
    %229 = vmatpush.msra.mxu0 %v109
    %230 = vmatpush.msra.mxu0 %v108
    %231 = vmatpush.msra.mxu0 %v107
    %232 = vmatpush.msra.mxu0 %v106
    %233 = vmatpush.msra.mxu0 %v105
    %234 = vmatpush.msra.mxu0 %v104
    %235 = vmatpush.msra.mxu0 %v103
    %236 = vmatpush.msra.mxu0 %v102
    %237 = vmatpush.msra.mxu0 %v101
    %238 = vmatpush.msra.mxu0 %v100
    %239 = vmatpush.msra.mxu0 %v99
    %240 = vmatpush.msra.mxu0 %v98
    %241 = vmatpush.msra.mxu0 %v97
    %242 = vmatpush.msra.mxu0 %v96
    %243 = vmatpush.msra.mxu0 %v95
    %244 = vmatmul.f32.gmra.mxu0 %v140
    %v245 = vpop.f32.mrf.mxu0
    %v246 = vadd.f32 %v226, %v245
    %247 = vdwg.mxu0
    %248 = vmatpush.msra.mxu0 %v126
    %249 = vmatpush.msra.mxu0 %v125
    %250 = vmatpush.msra.mxu0 %v124
    %251 = vmatpush.msra.mxu0 %v123
    %252 = vmatpush.msra.mxu0 %v122
    %253 = vmatpush.msra.mxu0 %v121
    %254 = vmatpush.msra.mxu0 %v120
    %255 = vmatpush.msra.mxu0 %v119
    %256 = vmatpush.msra.mxu0 %v118
    %257 = vmatpush.msra.mxu0 %v117
    %258 = vmatpush.msra.mxu0 %v116
    %259 = vmatpush.msra.mxu0 %v115
    %260 = vmatpush.msra.mxu0 %v114
    %261 = vmatpush.msra.mxu0 %v113
    %262 = vmatpush.msra.mxu0 %v112
    %263 = vmatpush.msra.mxu0 %v111
    %264 = vmatmul.f32.gmra.mxu0 %v141
    %v265 = vpop.f32.mrf.mxu0
    %v266 = vadd.f32 %v246, %v265
    %267 = vdwg.mxu0
    %v268 = vtanh.pop %v266
    %v269 = vld [vmem:[%s4] sm:$0xff]
    %v270 = vld [vmem:[%s4 + $0x8] sm:$0xff]
    %v271 = vld [vmem:[%s4 + $0x10] sm:$0xff]
    %v272 = vld [vmem:[%s4 + $0x18] sm:$0xff]
    %vm273 = vcmask 261120
    %v275 = vsel %vm273, %v268, 0
    %277 = vmatpush.msra.mxu0 0.0
    %278 = vmatpush.msra.mxu0 0.0
    %279 = vmatpush.msra.mxu0 0.0
    %280 = vmatpush.msra.mxu0 0.0
    %281 = vmatpush.msra.mxu0 0.0
    %282 = vmatpush.msra.mxu0 0.0
    %283 = vmatpush.msra.mxu0 0.0
    %284 = vmatpush.msra.mxu0 0.0
    %285 = vmatpush.msra.mxu0 0.0
    %286 = vmatpush.msra.mxu0 0.0
    %287 = vmatpush.msra.mxu0 0.0
    %288 = vmatpush.msra.mxu0 0.0
    %289 = vmatpush.msra.mxu0 %v272
    %290 = vmatpush.msra.mxu0 %v271
    %291 = vmatpush.msra.mxu0 %v270
    %292 = vmatpush.msra.mxu0 %v269
    %293 = vmatmul.f32.gmra.mxu0 %v275
    %v294 = vpop.f32.mrf.mxu0
    %v295 = vadd.f32 0.0, %v294
    %296 = vdwg.mxu0
    %v297 = vld [vmem:[%s3] sm:$0xff]
    %v299 = vsel %vm273, %v297, 0
    %301 = vmatpush.msra.mxu0 0.0
    %302 = vmatpush.msra.mxu0 0.0
    %303 = vmatpush.msra.mxu0 0.0
    %304 = vmatpush.msra.mxu0 0.0
    %305 = vmatpush.msra.mxu0 0.0
    %306 = vmatpush.msra.mxu0 0.0
    %307 = vmatpush.msra.mxu0 0.0
    %308 = vmatpush.msra.mxu0 0.0
    %309 = vmatpush.msra.mxu0 0.0
    %310 = vmatpush.msra.mxu0 0.0
    %311 = vmatpush.msra.mxu0 0.0
    %312 = vmatpush.msra.mxu0 0.0
    %313 = vmatpush.msra.mxu0 %v272
    %314 = vmatpush.msra.mxu0 %v271
    %315 = vmatpush.msra.mxu0 %v270
    %316 = vmatpush.msra.mxu0 %v269
    %317 = vmatmul.f32.gmra.mxu0 %v299
    %v318 = vpop.f32.mrf.mxu0
    %v319 = vadd.f32 0.0, %v318
    %320 = vdwg.mxu0
    %v322 = vrot.slane %v295, 1
    %v323 = vperm.slane %v295, 0
    %v324 = vperm.slane %v322, 0
    %v327 = vadd.f32 %v323, %v319
    %v328 = vadd.f32 %v324, %v319
    %v329 = vld [vmem:[%s5] sm:$0x1]
    %v331 = vperm.slane %v329, 0
    %v333 = vadd.f32 %v327, %v331
    %v334 = vadd.f32 %v328, %v331
    %335 = vmax.xlane.f32.xlu0 %v333
    %v336 = vpop.xlane.xlu0 %335
    %337 = vmax.xlane.f32.xlu0 %v334
    %v338 = vpop.xlane.xlu0 %337
    %v339 = vsub.f32 %v333, %v336
    %v340 = vsub.f32 %v334, %v338
    %v341 = vmul.f32 %v339, 1.442695
    %v342 = vpow.pop %v341
    %v343 = vmul.f32 %v340, 1.442695
    %v344 = vpow.pop %v343
    %345 = vadd.xlane.f32.xlu0 %v342
    %v346 = vpop.xlane.xlu0 %345
    %347 = vadd.xlane.f32.xlu0 %v344
    %v348 = vpop.xlane.xlu0 %347
    %v349 = vrcp.pop %v346
    %v350 = vrcp.pop %v348
    %v351 = vmul.f32 %v342, %v349
    %v352 = vmul.f32 %v344, %v350
    %v353 = vld [vmem:[%s6] sm:$0x3]
    %vm354 = vcmp.ne.s32.totalorder %v353, 0
    %v355 = vsel %vm354, 1, 0
    %v356 = vcvt.s32.f32 %v355
    %v358 = vrot.slane %v356, 1
    %v359 = vlaneseq
    %v360 = vand.u32 %v359, 127
    %v361 = vlaneseq
    %v362 = vshrl.u32 %v361, 7
    %vm363 = vcmp.ge.s32.totalorder %v360, 1
    %vm364 = vcmp.le.s32.totalorder %v360, %v362
    %vm365 = vmand %vm363, %vm364
    %v366 = vsel %vm365, 1, 0
    %vm367 = vcmp.eq.s32.totalorder %v366, 1
    %v368 = vperm.slane %v356, 0
    %v369 = vperm.slane %v358, 0
    %v372 = vsel %vm367, %v368, 1.0
    %v373 = vsel %vm367, %v369, 1.0
    %vm374 = vcmask 64512
    %v375 = vsel %vm374, %v372, inf
    %376 = vmin.xlane.f32.xlu0 %v375
    %v377 = vpop.xlane.xlu0 %376
    %v378 = vsel %vm374, %v373, inf
    %379 = vmin.xlane.f32.xlu0 %v378
    %v380 = vpop.xlane.xlu0 %379
    %v381 = vmul.f32 %v351, %v377
    %v382 = vmul.f32 %v352, %v380
    %v383 = vrot.slane %v381, 4
    %v384 = vmax.f32 %v381, %v383
    %v385 = vrot.slane %v384, 2
    %v386 = vmax.f32 %v384, %v385
    %v387 = vrot.slane %v386, 1
    %v388 = vmax.f32 %v386, %v387
    %v389 = vrot.slane %v382, 4
    %v390 = vmax.f32 %v382, %v389
    %v391 = vrot.slane %v390, 2
    %v392 = vmax.f32 %v390, %v391
    %v393 = vrot.slane %v392, 1
    %v394 = vmax.f32 %v392, %v393
    %vm397 = vcmask 1041409
    %v398 = vsel %vm397, %v394, %v388
    %400 = vst [vmem:[#allocation2] sm:$0x3] %v398
    %v401 = vperm.slane %v353, 0
    %v402 = vlaneseq
    %v403 = vshrl.u32 %v402, 7
    %405 = vset.pattern.permute.xlu0 %v403
    %406 = vperm.xlu0 %405, %v401
    %v407 = vpop.permute.xlu0 %406
    %v408 = vperm.slane %v353, 1
    %v409 = vlaneseq
    %v410 = vshrl.u32 %v409, 7
    %412 = vset.pattern.permute.xlu0 %v410
    %413 = vperm.xlu0 %412, %v408
    %v414 = vpop.permute.xlu0 %413
    %vm415 = vcmp.eq.s32.totalorder %v360, %v407
    %vm416 = vcmp.eq.s32.totalorder %v360, %v414
    %v417 = vsel %vm415, 1, 0
    %v418 = vsel %vm416, 1, 0
    %v419 = vcvt.s32.f32 %v417
    %v420 = vcvt.s32.f32 %v418
    %v421 = vrot.slane %v419, 4
    %v422 = vmax.f32 %v419, %v421
    %v423 = vrot.slane %v422, 2
    %v424 = vmax.f32 %v422, %v423
    %v425 = vrot.slane %v424, 1
    %v426 = vmax.f32 %v424, %v425
    %v427 = vrot.slane %v420, 4
    %v428 = vmax.f32 %v420, %v427
    %v429 = vrot.slane %v428, 2
    %v430 = vmax.f32 %v428, %v429
    %v431 = vrot.slane %v430, 1
    %v432 = vmax.f32 %v430, %v431
    %vm433 = vcmp.eq.s32.totalorder %v360, 0
    %v436 = vsel %vm397, %v432, %v426
    %v438 = vsel %vm433, 0.0, %v436
    %vm439 = vcmp.gt.f32.partialorder %v438, 0.5
    %v440 = vsel %vm439, 0.9, 0.00078125
    %v441 = vmax.f32 %v388, 1e-07
    %v442 = vmax.f32 %v394, 1e-07
    %v443 = vmin.f32 %v441, 0.9999999
    %v444 = vmin.f32 %v442, 0.9999999
    %v445 = vlog2.pop %v443
    %v446 = vmul.f32 %v445, 0.6931472
    %v447 = vlog2.pop %v444
    %v448 = vmul.f32 %v447, 0.6931472
    %v451 = vsel %vm397, %v448, %v446
    %v453 = vmul.f32 %v440, %v451
    %v454 = vsub.f32 1.0, %v440
    %v455 = vsub.f32 1.0, %v443
    %v456 = vsub.f32 1.0, %v444
    %v457 = vlog2.pop %v455
    %v458 = vmul.f32 %v457, 0.6931472
    %v459 = vlog2.pop %v456
    %v460 = vmul.f32 %v459, 0.6931472
    %v463 = vsel %vm397, %v460, %v458
    %v465 = vmul.f32 %v454, %v463
    %v466 = vadd.f32 %v453, %v465
    %v467 = vsub.f32 0.0, %v466
    %vm468 = vcmask 1041408
    %v469 = vsel %vm468, %v467, 0.0
    %470 = vadd.xlane.f32.xlu0 %v469
    %v471 = vpop.xlane.xlu0 %470
    %v472 = vrcp.pop 128.0
    %v473 = vmul.f32 128.0, %v472
    %v474 = vsub.f32 1.0, %v473
    %v475 = vmul.f32 %v472, %v474
    %v476 = vadd.f32 %v472, %v475
    %vm477 = vweird.f32 %v472
    %v478 = vsel %vm477, %v472, %v476
    %v479 = vmul.f32 %v471, %v478
    %480 = vst [vmem:[%s8] sm:$0x3] %v479
    // Predicated region
    $region30: #{ingredients_forward.1} parent=1 // pred_check
      _
    $region31: #{ingredients_forward.1} parent=1 // pred_check_branch
      %482 = sbr.rel (0) target = $region33
    $region32: #{ingredients_forward.1} parent=1 // pred_region
      %484 = vsyncadd [#allocation3], 0
      %s486 = sshll.u32 [#allocation2], 4
      %s487 = int_to_ptr.vmem [resolvable:$true] %s486
      %s488 = sshll.u32 %s7, 4
      %s489 = int_to_ptr.hbm [resolvable:$true] %s488
      %491 = dma.vmem_to_hbm [thread:$0]  %s487, 32, %s489, [#allocation3]
    $region33: #{ingredients_forward.1} parent=1 // pred_fallthru
      _
    // Predicated region
    $region34: #{ingredients_forward.1} parent=1 // pred_check
      _
    $region35: #{ingredients_forward.1} parent=1 // pred_check_branch
      %493 = sbr.rel (0) target = $region37
    $region36: #{ingredients_forward.1} parent=1 // pred_region
      _
    $region37: #{ingredients_forward.1} parent=1 // pred_fallthru
      _
    // Predicated region
    $region38: #{ingredients_forward.1} parent=1 // pred_check
      _
    $region39: #{ingredients_forward.1} parent=1 // pred_check_branch
      %495 = sbr.rel (0) target = $region41
    $region40: #{ingredients_forward.1} parent=1 // pred_region
      %497 = dma.done [#allocation3], 32
    $region41: #{ingredients_forward.1} parent=1 // pred_fallthru
      _
    // Predicated region
    $region42: #{ingredients_forward.1} parent=1 // pred_check
      _
    $region43: #{ingredients_forward.1} parent=1 // pred_check_branch
      %499 = sbr.rel (0) target = $region45
    $region44: #{ingredients_forward.1} parent=1 // pred_region
      _
    $region45: #{ingredients_forward.1} parent=1 // pred_fallthru
      _
    %500 = vsyncpa [#allocation3], 1

</llo_original>
